<compile_context>
chip_gen: v7x
topology: tpu7x:2x2x1
jax: 0.10.0
libtpu: 0.0.40
codegen_flags: <defaults>
</compile_context>

<pallas_src>
import jax
import jax.numpy as jnp
from jax import lax
from jax.experimental import pallas as pl
from jax.experimental.pallas import tpu as pltpu


def _round_up(x, m):
    return ((x + m - 1) // m) * m


def make_downstream_kernel(B_TILE, T_TILE, C_actual):
    def kernel(feat_ref, len_ref, label_ref,
               wp_ref, bp_ref, wc_ref, bc_ref,
               logits_ref, nll_ref, pred_ref,
               acc_ref):
        t = pl.program_id(1)
        n_t = pl.num_programs(1)

        # --- init the per-batch-block time-sum accumulator ---
        @pl.when(t == 0)
        def _init():
            acc_ref[...] = jnp.zeros_like(acc_ref)

        # --- length-masked time-sum of raw features (pool BEFORE project) ---
        # up-cast bf16 -> f32 before any VPU elementwise work (v5e has no bf16 VPU path)
        x = feat_ref[...].astype(jnp.float32)                      # (B_TILE, T_TILE, Du_pad)
        lens = len_ref[...]                                        # (B_TILE, 1) int32
        t_ids = (lax.broadcasted_iota(jnp.int32, (B_TILE, T_TILE, 1), 1)
                 + t * T_TILE)                                     # global frame index
        mask = (t_ids < lens[:, None, :]).astype(jnp.float32)      # (B_TILE, T_TILE, 1)
        acc_ref[...] += jnp.sum(x * mask, axis=1)                  # (B_TILE, Du_pad) f32

        # --- finalize: mean -> projector -> classifier -> CE / argmax ---
        @pl.when(t == n_t - 1)
        def _final():
            denom = jnp.maximum(lens, 1).astype(jnp.float32)       # guard zero-length rows
            pooled = acc_ref[...] / denom                          # (B_TILE, Du_pad)

            proj = jnp.dot(pooled, wp_ref[...],
                           preferred_element_type=jnp.float32) + bp_ref[...]     # (B_TILE, P_pad)
            logits = jnp.dot(proj, wc_ref[...],
                             preferred_element_type=jnp.float32) + bc_ref[...]   # (B_TILE, C_pad)

            # mask out padded classes so softmax / argmax ignore them
            c_ids = lax.broadcasted_iota(jnp.int32, logits.shape, 1)
            logits = jnp.where(c_ids < C_actual, logits, jnp.float32(-1e30))
            logits_ref[...] = logits

            # per-example cross-entropy (mean over batch done host-side)
            m = jnp.max(logits, axis=-1, keepdims=True)
            lse = m + jnp.log(jnp.sum(jnp.exp(logits - m), axis=-1, keepdims=True))
            onehot = (c_ids == label_ref[...]).astype(jnp.float32)
            picked = jnp.sum(logits * onehot, axis=-1, keepdims=True)
            nll_ref[...] = lse - picked

            # argmax (first maximal index), done with a float min-reduce for safe lowering
            is_max = (logits == m)
            big = jnp.float32(logits.shape[1])
            idx = jnp.min(jnp.where(is_max, c_ids.astype(jnp.float32), big),
                          axis=-1, keepdims=True)
            pred_ref[...] = idx.astype(jnp.int32)

    return kernel


def downstream_forward(features, features_len, labels, wp, bp, wc, bc,
                       *, b_tile=8, t_tile=512):
    """features: (B, T, D_up) f32 zero-padded (pad_sequence semantics);
    features_len, labels: (B,) int32.  Returns (logits, loss, predicted_classid)."""
    B, T, Du = features.shape
    P = wp.shape[1]
    C = wc.shape[1]

    B_TILE = b_tile
    B_pad = _round_up(B, B_TILE)
    # On v7x (64 MiB VMEM) keep the feature tile small (e.g. t_tile<=512 at Du~768 bf16);
    # on v5e/v6e (128 MiB) t_tile can be swept up to 1024-2048.
    T_TILE = min(t_tile, _round_up(T, 8))
    T_pad = _round_up(T, T_TILE)
    Du_pad = _round_up(Du, 128)
    P_pad = _round_up(P, 128)
    C_pad = _round_up(C, 128)

    # --- pad + cast: features streamed as bf16, weights stay f32 (tiny, VMEM-resident) ---
    feats = jnp.zeros((B_pad, T_pad, Du_pad), jnp.bfloat16)
    feats = feats.at[:B, :T, :Du].set(features.astype(jnp.bfloat16))
    lens2 = jnp.zeros((B_pad, 1), jnp.int32).at[:B, 0].set(features_len.astype(jnp.int32))
    labels2 = jnp.zeros((B_pad, 1), jnp.int32).at[:B, 0].set(labels.astype(jnp.int32))
    wp_p = jnp.zeros((Du_pad, P_pad), jnp.float32).at[:Du, :P].set(wp.astype(jnp.float32))
    bp_p = jnp.zeros((1, P_pad), jnp.float32).at[:, :P].set(bp.reshape(1, P).astype(jnp.float32))
    wc_p = jnp.zeros((P_pad, C_pad), jnp.float32).at[:P, :C].set(wc.astype(jnp.float32))
    bc_p = jnp.zeros((1, C_pad), jnp.float32).at[:, :C].set(bc.reshape(1, C).astype(jnp.float32))

    n_b = B_pad // B_TILE
    n_t = T_pad // T_TILE

    kernel = make_downstream_kernel(B_TILE, T_TILE, C)

    cost = pl.CostEstimate(
        flops=2 * B_pad * T_pad * Du_pad
              + 2 * B_pad * Du_pad * P_pad
              + 2 * B_pad * P_pad * C_pad,
        transcendentals=B_pad * C_pad,
        bytes_accessed=feats.size * 2
                       + (wp_p.size + bp_p.size + wc_p.size + bc_p.size) * 4
                       + (lens2.size + labels2.size) * 4
                       + B_pad * C_pad * 4 + B_pad * 2 * 4,
    )

    logits_pad, nll, pred = pl.pallas_call(
        kernel,
        grid=(n_b, n_t),
        in_specs=[
            pl.BlockSpec((B_TILE, T_TILE, Du_pad), lambda b, t: (b, t, 0)),
            pl.BlockSpec((B_TILE, 1), lambda b, t: (b, 0)),
            pl.BlockSpec((B_TILE, 1), lambda b, t: (b, 0)),
            pl.BlockSpec((Du_pad, P_pad), lambda b, t: (0, 0)),   # VMEM-resident across T
            pl.BlockSpec((1, P_pad), lambda b, t: (0, 0)),
            pl.BlockSpec((P_pad, C_pad), lambda b, t: (0, 0)),
            pl.BlockSpec((1, C_pad), lambda b, t: (0, 0)),
        ],
        out_specs=[
            pl.BlockSpec((B_TILE, C_pad), lambda b, t: (b, 0)),
            pl.BlockSpec((B_TILE, 1), lambda b, t: (b, 0)),
            pl.BlockSpec((B_TILE, 1), lambda b, t: (b, 0)),
        ],
        out_shape=(
            jax.ShapeDtypeStruct((B_pad, C_pad), jnp.float32),
            jax.ShapeDtypeStruct((B_pad, 1), jnp.float32),
            jax.ShapeDtypeStruct((B_pad, 1), jnp.int32),
        ),
        scratch_shapes=[pltpu.VMEM((B_TILE, Du_pad), jnp.float32)],
        compiler_params=pltpu.CompilerParams(
            dimension_semantics=("parallel", "arbitrary"),   # batch shards across TCs (v7x)
            vmem_limit_bytes=32 * 1024 * 1024,               # safe on v5e/v6e/v7x for these tiles
        ),
        cost_estimate=cost,
    )(feats, lens2, labels2, wp_p, bp_p, wc_p, bc_p)

    logits = logits_pad[:B, :C]
    loss = jnp.sum(nll[:B, 0]) / B          # CrossEntropyLoss mean over the real batch rows
    predicted_classid = pred[:B, 0]
    return logits, loss, predicted_classid


if __name__ == "__main__":
    # Small shapes consistent with the module:
    #   batch=2, max seq len=24 (variable lengths), upstream_dim=32, projector_dim=16, speaker_num=8
    B, T, Du, P, C = 2, 24, 32, 16, 8
    key = jax.random.PRNGKey(0)
    k1, k2, k3, k4, k5 = jax.random.split(key, 5)

    features_len = jnp.array([24, 17], dtype=jnp.int32)      # variable utterance lengths
    feats = jax.random.normal(k1, (B, T, Du), jnp.float32)
    # emulate torch pad_sequence(batch_first=True) zero padding
    tmask = (jnp.arange(T)[None, :] < features_len[:, None]).astype(jnp.float32)
    feats = feats * tmask[:, :, None]
    labels = jnp.array([3, 1], dtype=jnp.int32)

    # deterministic synthetic parameters (projector + classifier linear layers, (in, out) layout)
    wp = 0.1 * jax.random.normal(k2, (Du, P), jnp.float32)
    bp = 0.01 * jax.random.normal(k3, (1, P), jnp.float32)
    wc = 0.1 * jax.random.normal(k4, (P, C), jnp.float32)
    bc = 0.01 * jax.random.normal(k5, (1, C), jnp.float32)

    # t_tile=8 forces a multi-step T reduction so the pipelined/accumulator path is exercised
    logits, loss, pred = downstream_forward(feats, features_len, labels, wp, bp, wc, bc,
                                            b_tile=8, t_tile=8)
    jax.block_until_ready((logits, loss, pred))

    # pure-JAX reference of the same forward semantics (project-then-pool), using the same
    # bf16-rounded feature stream the kernel consumes
    feats_q = feats.astype(jnp.bfloat16).astype(jnp.float32)
    proj_ref = feats_q @ wp + bp.reshape(1, 1, P)
    pooled_ref = (proj_ref * tmask[:, :, None]).sum(1) / features_len[:, None].astype(jnp.float32)
    logits_ref = pooled_ref @ wc + bc
    lse_ref = jax.scipy.special.logsumexp(logits_ref, axis=-1)
    loss_ref = jnp.mean(lse_ref - logits_ref[jnp.arange(B), labels])
    pred_ref = jnp.argmax(logits_ref, axis=-1)

    assert jnp.allclose(logits, logits_ref, atol=2e-3, rtol=2e-3), "logits mismatch"
    assert jnp.allclose(loss, loss_ref, atol=2e-3, rtol=2e-3), "loss mismatch"
    assert jnp.array_equal(pred, pred_ref), "predicted_classid mismatch"

    # records['acc'] bookkeeping equivalent (host-side glue)
    _acc = jnp.mean((pred == labels).astype(jnp.float32))
    jax.block_until_ready(_acc)

    print("KERNEL_OK")
</pallas_src>

<mosaic_0001>
module attributes {stable_mosaic.version = 11 : i64} {
  func.func @kernel(%arg0: i32, %arg1: i32, %arg2: memref<8x8x128xbf16, #tpu.memory_space<vmem>>, %arg3: memref<8x1xi32, #tpu.memory_space<vmem>>, %arg4: memref<8x1xi32, #tpu.memory_space<vmem>>, %arg5: memref<128x128xf32, #tpu.memory_space<vmem>>, %arg6: memref<1x128xf32, #tpu.memory_space<vmem>>, %arg7: memref<128x128xf32, #tpu.memory_space<vmem>>, %arg8: memref<1x128xf32, #tpu.memory_space<vmem>>, %arg9: memref<8x128xf32, #tpu.memory_space<vmem>>, %arg10: memref<8x1xf32, #tpu.memory_space<vmem>>, %arg11: memref<8x1xi32, #tpu.memory_space<vmem>>, %arg12: memref<8x128xf32, #tpu.memory_space<vmem>>) attributes {dimension_semantics = [#tpu.dimension_semantics<parallel>, #tpu.dimension_semantics<arbitrary>], iteration_bounds = array<i64: 1, 3>, scalar_prefetch = 0 : i64, scratch_operands = 1 : i64, tpu.core_type = #tpu.core_type<tc>, window_params = [{transform_indices = @transform_0, window_bounds = array<i64: 8, 8, 128>}, {transform_indices = @transform_1, window_bounds = array<i64: 8, 1>}, {transform_indices = @transform_2, window_bounds = array<i64: 8, 1>}, {pipeline_mode = #tpu.pipeline_mode<synchronous>, transform_indices = @transform_3, window_bounds = array<i64: 128, 128>}, {pipeline_mode = #tpu.pipeline_mode<synchronous>, transform_indices = @transform_4, window_bounds = array<i64: 1, 128>}, {pipeline_mode = #tpu.pipeline_mode<synchronous>, transform_indices = @transform_5, window_bounds = array<i64: 128, 128>}, {pipeline_mode = #tpu.pipeline_mode<synchronous>, transform_indices = @transform_6, window_bounds = array<i64: 1, 128>}, {transform_indices = @transform_7, window_bounds = array<i64: 8, 128>}, {transform_indices = @transform_8, window_bounds = array<i64: 8, 1>}, {transform_indices = @transform_9, window_bounds = array<i64: 8, 1>}]} {
    %c0_i32 = arith.constant 0 : i32
    %0 = arith.cmpi eq, %arg1, %c0_i32 : i32
    %1 = arith.extui %0 : i1 to i32
    %c0_i32_0 = arith.constant 0 : i32
    %2 = arith.cmpi ne, %1, %c0_i32_0 : i32
    scf.if %2 {
      %cst_10 = arith.constant 0.000000e+00 : f32
      %24 = vector.broadcast %cst_10 : f32 to vector<8x128xf32>
      %c0_11 = arith.constant 0 : index
      %c0_12 = arith.constant 0 : index
      %25 = vector.load %arg12[%c0_11, %c0_12] : memref<8x128xf32, #tpu.memory_space<vmem>>, vector<8x128xf32>
      tpu.vector_store %arg12[%c0_11, %c0_12], %24 {strides = array<i32>} : memref<8x128xf32, #tpu.memory_space<vmem>>, vector<8x128xf32>,
    } else {
    }
    %c0 = arith.constant 0 : index
    %c0_1 = arith.constant 0 : index
    %c0_2 = arith.constant 0 : index
    %3 = vector.load %arg2[%c0, %c0_1, %c0_2] : memref<8x8x128xbf16, #tpu.memory_space<vmem>>, vector<8x8x128xbf16>
    %4 = arith.extf %3 : vector<8x8x128xbf16> to vector<8x8x128xf32>
    %c0_3 = arith.constant 0 : index
    %c0_4 = arith.constant 0 : index
    %5 = vector.load %arg3[%c0_3, %c0_4] : memref<8x1xi32, #tpu.memory_space<vmem>>, vector<8x1xi32>
    %6 = tpu.iota {dimensions = array<i32: 1>} : vector<8x8x1xi32>
    %c8_i32 = arith.constant 8 : i32
    %7 = arith.muli %arg1, %c8_i32 : i32
    %8 = vector.broadcast %7 : i32 to vector<8x8x1xi32>
    %9 = arith.addi %6, %8 : vector<8x8x1xi32>
    %10 = vector.shape_cast %5 : vector<8x1xi32> to vector<8x1x1xi32>
    %11 = vector.broadcast %10 : vector<8x1x1xi32> to vector<8x8x1xi32>
    %12 = arith.cmpi slt, %9, %11 : vector<8x8x1xi32>
    %13 = arith.extui %12 : vector<8x8x1xi1> to vector<8x8x1xi32>
    %14 = arith.sitofp %13 : vector<8x8x1xi32> to vector<8x8x1xf32>
    %c0_5 = arith.constant 0 : index
    %c0_6 = arith.constant 0 : index
    %15 = vector.load %arg12[%c0_5, %c0_6] : memref<8x128xf32, #tpu.memory_space<vmem>>, vector<8x128xf32>
    %16 = vector.broadcast %14 : vector<8x8x1xf32> to vector<8x8x128xf32>
    %17 = arith.mulf %4, %16 : vector<8x8x128xf32>
    %cst = arith.constant dense<0.000000e+00> : vector<8x128xf32>
    %18 = vector.multi_reduction <add>, %17, %cst [1] : vector<8x8x128xf32> to vector<8x128xf32>
    %19 = arith.addf %15, %18 : vector<8x128xf32>
    %c0_7 = arith.constant 0 : index
    %c0_8 = arith.constant 0 : index
    %20 = vector.load %arg12[%c0_7, %c0_8] : memref<8x128xf32, #tpu.memory_space<vmem>>, vector<8x128xf32>
    tpu.vector_store %arg12[%c0_7, %c0_8], %19 {strides = array<i32>} : memref<8x128xf32, #tpu.memory_space<vmem>>, vector<8x128xf32>,
    %c2_i32 = arith.constant 2 : i32
    %21 = arith.cmpi eq, %arg1, %c2_i32 : i32
    %22 = arith.extui %21 : i1 to i32
    %c0_i32_9 = arith.constant 0 : i32
    %23 = arith.cmpi ne, %22, %c0_i32_9 : i32
    scf.if %23 {
      %c1_i32 = arith.constant 1 : i32
      %24 = vector.broadcast %c1_i32 : i32 to vector<8x1xi32>
      %25 = arith.maxsi %5, %24 : vector<8x1xi32>
      %26 = arith.sitofp %25 : vector<8x1xi32> to vector<8x1xf32>
      %c0_10 = arith.constant 0 : index
      %c0_11 = arith.constant 0 : index
      %27 = vector.load %arg12[%c0_10, %c0_11] : memref<8x128xf32, #tpu.memory_space<vmem>>, vector<8x128xf32>
      %28 = vector.broadcast %26 : vector<8x1xf32> to vector<8x128xf32>
      %29 = arith.divf %27, %28 : vector<8x128xf32>
      %c0_12 = arith.constant 0 : index
      %c0_13 = arith.constant 0 : index
      %30 = vector.load %arg5[%c0_12, %c0_13] : memref<128x128xf32, #tpu.memory_space<vmem>>, vector<128x128xf32>
      %cst_14 = arith.constant dense<0.000000e+00> : vector<8x128xf32>
      %31 = tpu.matmul %29, %30, %cst_14 {dimension_numbers = #tpu.dot_dimension_numbers<[1], [0], [0], [1], [0, 0, 1, 1], [], []>} : vector<8x128xf32>, vector<128x128xf32>, vector<8x128xf32> -> vector<8x128xf32>
      %c0_15 = arith.constant 0 : index
      %c0_16 = arith.constant 0 : index
      %32 = vector.load %arg6[%c0_15, %c0_16] : memref<1x128xf32, #tpu.memory_space<vmem>>, vector<1x128xf32>
      %33 = vector.broadcast %32 : vector<1x128xf32> to vector<8x128xf32>
      %34 = arith.addf %31, %33 : vector<8x128xf32>
      %c0_17 = arith.constant 0 : index
      %c0_18 = arith.constant 0 : index
      %35 = vector.load %arg7[%c0_17, %c0_18] : memref<128x128xf32, #tpu.memory_space<vmem>>, vector<128x128xf32>
      %cst_19 = arith.constant dense<0.000000e+00> : vector<8x128xf32>
      %36 = tpu.matmul %34, %35, %cst_19 {dimension_numbers = #tpu.dot_dimension_numbers<[1], [0], [0], [1], [0, 0, 1, 1], [], []>} : vector<8x128xf32>, vector<128x128xf32>, vector<8x128xf32> -> vector<8x128xf32>
      %c0_20 = arith.constant 0 : index
      %c0_21 = arith.constant 0 : index
      %37 = vector.load %arg8[%c0_20, %c0_21] : memref<1x128xf32, #tpu.memory_space<vmem>>, vector<1x128xf32>
      %38 = vector.broadcast %37 : vector<1x128xf32> to vector<8x128xf32>
      %39 = arith.addf %36, %38 : vector<8x128xf32>
      %40 = tpu.iota {dimensions = array<i32: 1>} : vector<8x128xi32>
      %c8_i32_22 = arith.constant 8 : i32
      %41 = vector.broadcast %c8_i32_22 : i32 to vector<8x128xi32>
      %42 = arith.cmpi slt, %40, %41 : vector<8x128xi32>
      %cst_23 = arith.constant -1.000000e+30 : f32
      %43 = vector.broadcast %cst_23 : f32 to vector<8x128xf32>
      %44 = arith.select %42, %39, %43 : vector<8x128xi1>, vector<8x128xf32>
      %c0_24 = arith.constant 0 : index
      %c0_25 = arith.constant 0 : index
      %45 = vector.load %arg9[%c0_24, %c0_25] : memref<8x128xf32, #tpu.memory_space<vmem>>, vector<8x128xf32>
      tpu.vector_store %arg9[%c0_24, %c0_25], %44 {strides = array<i32>} : memref<8x128xf32, #tpu.memory_space<vmem>>, vector<8x128xf32>,
      %cst_26 = arith.constant dense<0xFF800000> : vector<8xf32>
      %46 = vector.multi_reduction <maximumf>, %44, %cst_26 [1] : vector<8x128xf32> to vector<8xf32>
      %47 = vector.shape_cast %46 : vector<8xf32> to vector<8x1xf32>
      %48 = vector.broadcast %47 : vector<8x1xf32> to vector<8x128xf32>
      %49 = arith.subf %44, %48 : vector<8x128xf32>
      %50 = math.exp %49 : vector<8x128xf32>
      %cst_27 = arith.constant dense<0.000000e+00> : vector<8xf32>
      %51 = vector.multi_reduction <add>, %50, %cst_27 [1] : vector<8x128xf32> to vector<8xf32>
      %52 = vector.shape_cast %51 : vector<8xf32> to vector<8x1xf32>
      %53 = math.log %52 : vector<8x1xf32>
      %54 = arith.addf %47, %53 : vector<8x1xf32>
      %c0_28 = arith.constant 0 : index
      %c0_29 = arith.constant 0 : index
      %55 = vector.load %arg4[%c0_28, %c0_29] : memref<8x1xi32, #tpu.memory_space<vmem>>, vector<8x1xi32>
      %56 = vector.broadcast %55 : vector<8x1xi32> to vector<8x128xi32>
      %57 = arith.cmpi eq, %40, %56 : vector<8x128xi32>
      %58 = arith.extui %57 : vector<8x128xi1> to vector<8x128xi32>
      %59 = arith.sitofp %58 : vector<8x128xi32> to vector<8x128xf32>
      %60 = arith.mulf %44, %59 : vector<8x128xf32>
      %cst_30 = arith.constant dense<0.000000e+00> : vector<8xf32>
      %61 = vector.multi_reduction <add>, %60, %cst_30 [1] : vector<8x128xf32> to vector<8xf32>
      %62 = vector.shape_cast %61 : vector<8xf32> to vector<8x1xf32>
      %63 = arith.subf %54, %62 : vector<8x1xf32>
      %c0_31 = arith.constant 0 : index
      %c0_32 = arith.constant 0 : index
      %64 = vector.load %arg10[%c0_31, %c0_32] : memref<8x1xf32, #tpu.memory_space<vmem>>, vector<8x1xf32>
      tpu.vector_store %arg10[%c0_31, %c0_32], %63 {strides = array<i32>} : memref<8x1xf32, #tpu.memory_space<vmem>>, vector<8x1xf32>,
      %65 = vector.broadcast %47 : vector<8x1xf32> to vector<8x128xf32>
      %66 = arith.cmpf oeq, %44, %65 : vector<8x128xf32>
      %67 = arith.sitofp %40 : vector<8x128xi32> to vector<8x128xf32>
      %cst_33 = arith.constant 1.280000e+02 : f32
      %68 = vector.broadcast %cst_33 : f32 to vector<8x128xf32>
      %69 = arith.select %66, %67, %68 : vector<8x128xi1>, vector<8x128xf32>
      %cst_34 = arith.constant dense<0x7F800000> : vector<8xf32>
      %70 = vector.multi_reduction <minimumf>, %69, %cst_34 [1] : vector<8x128xf32> to vector<8xf32>
      %71 = vector.shape_cast %70 : vector<8xf32> to vector<8x1xf32>
      %72 = arith.fptosi %71 : vector<8x1xf32> to vector<8x1xi32>
      %c0_35 = arith.constant 0 : index
      %c0_36 = arith.constant 0 : index
      %73 = vector.load %arg11[%c0_35, %c0_36] : memref<8x1xi32, #tpu.memory_space<vmem>>, vector<8x1xi32>
      tpu.vector_store %arg11[%c0_35, %c0_36], %72 {strides = array<i32>} : memref<8x1xi32, #tpu.memory_space<vmem>>, vector<8x1xi32>,
    } else {
    }
    return
  }
  func.func @transform_0(%arg0: i32, %arg1: i32) -> (i32, i32, i32) {
    %c0_i32 = arith.constant 0 : i32
    %c0_i32_0 = arith.constant 0 : i32
    return %arg0, %arg1, %c0_i32 : i32, i32, i32
  }
  func.func @transform_1(%arg0: i32, %arg1: i32) -> (i32, i32) {
    %c0_i32 = arith.constant 0 : i32
    %c0_i32_0 = arith.constant 0 : i32
    return %arg0, %c0_i32 : i32, i32
  }
  func.func @transform_2(%arg0: i32, %arg1: i32) -> (i32, i32) {
    %c0_i32 = arith.constant 0 : i32
    %c0_i32_0 = arith.constant 0 : i32
    return %arg0, %c0_i32 : i32, i32
  }
  func.func @transform_3(%arg0: i32, %arg1: i32) -> (i32, i32) {
    %c0_i32 = arith.constant 0 : i32
    %c0_i32_0 = arith.constant 0 : i32
    %c0_i32_1 = arith.constant 0 : i32
    return %c0_i32, %c0_i32_0 : i32, i32
  }
  func.func @transform_4(%arg0: i32, %arg1: i32) -> (i32, i32) {
    %c0_i32 = arith.constant 0 : i32
    %c0_i32_0 = arith.constant 0 : i32
    %c0_i32_1 = arith.constant 0 : i32
    return %c0_i32, %c0_i32_0 : i32, i32
  }
  func.func @transform_5(%arg0: i32, %arg1: i32) -> (i32, i32) {
    %c0_i32 = arith.constant 0 : i32
    %c0_i32_0 = arith.constant 0 : i32
    %c0_i32_1 = arith.constant 0 : i32
    return %c0_i32, %c0_i32_0 : i32, i32
  }
  func.func @transform_6(%arg0: i32, %arg1: i32) -> (i32, i32) {
    %c0_i32 = arith.constant 0 : i32
    %c0_i32_0 = arith.constant 0 : i32
    %c0_i32_1 = arith.constant 0 : i32
    return %c0_i32, %c0_i32_0 : i32, i32
  }
  func.func @transform_7(%arg0: i32, %arg1: i32) -> (i32, i32) {
    %c0_i32 = arith.constant 0 : i32
    %c0_i32_0 = arith.constant 0 : i32
    return %arg0, %c0_i32 : i32, i32
  }
  func.func @transform_8(%arg0: i32, %arg1: i32) -> (i32, i32) {
    %c0_i32 = arith.constant 0 : i32
    %c0_i32_0 = arith.constant 0 : i32
    return %arg0, %c0_i32 : i32, i32
  }
  func.func @transform_9(%arg0: i32, %arg1: i32) -> (i32, i32) {
    %c0_i32 = arith.constant 0 : i32
    %c0_i32_0 = arith.constant 0 : i32
    return %arg0, %c0_i32 : i32, i32
  }
}

</mosaic_0001>

<llo_original>
// kernel: tpu_custom_call.1
$region0: #{tpu_custom_call.1}
  #allocation0 [shape = 'u32[]', space=smem, size = 0x4, offset = 0x4, fixed_abs, tag = 'smem constant byte address 0x4 - core index']
  #allocation1 [shape = 'u32[144,128]{1,0:T(1,128)}', space=vmem, size = 0x12000, scoped, tag = 'internal scratch']
  #allocation2 [shape = 'f32[8,128]{1,0:T(8,128)}', space=vmem, size = 0x1000, scoped, tag = 'scratch operand']
  %s0 = inlined_call_operand.hbm [shape: bf16[8,24,128], index: 0, kind: input, shape index: {}]
  %s1 = inlined_call_operand.vmem [shape: s32[8,1], index: 1, kind: input, shape index: {}]
  %s2 = inlined_call_operand.vmem [shape: s32[8,1], index: 2, kind: input, shape index: {}]
  %s3 = inlined_call_operand.hbm [shape: f32[128,128], index: 3, kind: input, shape index: {}]
  %s4 = inlined_call_operand.vmem [shape: f32[1,128], index: 4, kind: input, shape index: {}]
  %s5 = inlined_call_operand.hbm [shape: f32[128,128], index: 5, kind: input, shape index: {}]
  %s6 = inlined_call_operand.vmem [shape: f32[1,128], index: 6, kind: input, shape index: {}]
  %s7 = inlined_call_operand.hbm [shape: f32[8,128], index: 7, kind: output, shape index: {0}]
  %s8 = inlined_call_operand.vmem [shape: f32[8,1], index: 8, kind: output, shape index: {1}]
  %s9 = inlined_call_operand.vmem [shape: s32[8,1], index: 9, kind: output, shape index: {2}]
  %10 = xla_tuple %s7, %s8, %s9
  %s11 = sld [smem:[#allocation0]]
  $region97: #{tpu_custom_call.1} parent=0
    _
  %s13 = ssub.s32 1, %s11
  %s14 = scalar_select 0, %s13, %s11
  $region1: #{tpu_custom_call.1} parent=0
    #allocation3 [shape = 'u8[32768]{0}', space=vmem, size = 0x8000, scoped, tag = 'input window, operand 0']
    #allocation4 [shape = 's32[2]{0}', space=sflag, size = 0x8, scoped, tag = 'scoped memory for tpu_custom_call.1']
    #allocation5 [shape = 's32[2]{0}', space=sflag, size = 0x8, scoped, tag = 'scoped memory for tpu_custom_call.1']
    #allocation6 [shape = 'u8[65536]{0}', space=vmem, size = 0x10000, scoped, tag = 'input window, operand 3, single buffered']
    #allocation7 [shape = 's32[1]{0}', space=sflag, size = 0x4, scoped, tag = 'scoped memory for tpu_custom_call.1']
    #allocation8 [shape = 'u8[65536]{0}', space=vmem, size = 0x10000, scoped, tag = 'input window, operand 5, single buffered']
    #allocation9 [shape = 'u8[4096]{0}', space=vmem, size = 0x1000, scoped, tag = 'output window, operand 0, single buffered']
    %15 = vsyncpa [#allocation4], 0
    %s16 = scalar_lea.sflag [#allocation4], 1
    %17 = vsyncpa %s16, 0
    %18 = vsyncpa [#allocation7], 0
    %19 = vsyncpa [#allocation5], 0
    loop: start=0, step=1, limit=5
    $region2: #{tpu_custom_call.1} parent=1 // loop_pre_header
      _
    $region3: #{tpu_custom_call.1} parent=1 // loop_header
      %s21 = sphi 0, %s25
      %p22 = scmp.ge.s32.totalorder %s21, 5
      %s28 = sphi 0, %s40
      %s29 = sphi 0, %s36
      %s30 = sphi 0, %s28
      %s31 = sphi 0, %s29
      %s32 = sphi 0, %s30
      %s33 = sphi 0, %s31
      %s45 = sphi 0, %s47
      %s48 = sphi 0, %s45
      %s49 = sphi 0, %s48
      %s65 = sphi 0, %s49
      %s71 = sphi 0, %s73
      %s74 = sphi 0, %s71
      %s75 = sphi 0, %s74
      %s91 = sphi 0, %s75
      %s97 = sphi 0, %s99
      %s100 = sphi 0, %s97
      %s101 = sphi 0, %s100
      %s117 = sphi 0, %s101
      %s121 = sphi 0, %s121
      %s123 = sphi 0, %s121
      %s124 = sphi 0, %s123
      %s138 = sphi 0, %s124
      %s142 = sphi 0, %s142
      %s144 = sphi 0, %s142
      %s145 = sphi 0, %s144
      %s159 = sphi 0, %s145
      %s163 = sphi 0, %s163
      %s165 = sphi 0, %s163
      %s166 = sphi 0, %s165
      %s180 = sphi 0, %s166
      %s184 = sphi 0, %s184
      %s186 = sphi 0, %s184
      %s187 = sphi 0, %s186
      %s201 = sphi 0, %s187
      %s207 = sphi 0, %s209
      %s210 = sphi 0, %s207
      %s211 = sphi 0, %s210
      %s227 = sphi 0, %s211
      %s233 = sphi 0, %s235
      %s236 = sphi 0, %s233
      %s237 = sphi 0, %s236
      %s253 = sphi 0, %s237
      %s259 = sphi 0, %s261
      %s262 = sphi 0, %s259
      %s263 = sphi 0, %s262
      %s279 = sphi 0, %s263
    $region4: #{tpu_custom_call.1} parent=1 // loop_header_branch
      %24 = sbr.rel (%p22) target = $region8
    $region5: #{tpu_custom_call.1} parent=1 // loop_body
      %s26 = ssub.s32 %s21, 1
      %s27 = ssub.s32 %s21, 2
      %s34 = sadd.s32 1, %s29
      %p35 = scmp.ge.s32.totalorder %s34, 3
      %s36 = scalar_select %p35, 0, %s34
      %s37 = sadd.s32 1, %s28
      %s38 = scalar_select %p35, %s37, %s28
      %p39 = scmp.ge.s32.totalorder %s38, 1
      %s40 = scalar_select %p39, 0, %s38
      %s41 = ssub.s32 %s28, %s40
      %s42 = ssub.s32 %s29, %s36
      %s43 = sor.u32 %s41, %s42
      %p44 = scmp.eq.s32.totalorder %s43, 0
      %s46 = sadd.s32 %s45, 1
      %s47 = scalar_select %p44, %s45, %s46
      %p50 = pneg %p44
      %p51 = scmp.eq.s32.totalorder %s21, 2
      %p52 = por %p50, %p51
      %p53 = scmp.ne.s32.totalorder %s45, %s48
      %p54 = scmp.eq.s32.totalorder %s21, 0
      %p55 = por %p53, %p54
      %p56 = scmp.ne.s32.totalorder %s45, %s48
      %p57 = scmp.eq.s32.totalorder %s26, 2
      %p58 = por %p56, %p57
      %p59 = scmp.ne.s32.totalorder %s48, %s49
      %p60 = scmp.eq.s32.totalorder %s26, 0
      %p61 = por %p59, %p60
      %p62 = scmp.ne.s32.totalorder %s48, %s49
      %p63 = scmp.eq.s32.totalorder %s27, 2
      %p64 = por %p62, %p63
      %p66 = scmp.ne.s32.totalorder %s49, %s65
      %p67 = scmp.eq.s32.totalorder %s27, 0
      %p68 = por %p66, %p67
      %s69 = ssub.s32 %s28, %s40
      %p70 = scmp.eq.s32.totalorder %s69, 0
      %s72 = sadd.s32 %s71, 1
      %s73 = scalar_select %p70, %s71, %s72
      %p76 = pneg %p70
      %p77 = scmp.eq.s32.totalorder %s21, 2
      %p78 = por %p76, %p77
      %p79 = scmp.ne.s32.totalorder %s71, %s74
      %p80 = scmp.eq.s32.totalorder %s21, 0
      %p81 = por %p79, %p80
      %p82 = scmp.ne.s32.totalorder %s71, %s74
      %p83 = scmp.eq.s32.totalorder %s26, 2
      %p84 = por %p82, %p83
      %p85 = scmp.ne.s32.totalorder %s74, %s75
      %p86 = scmp.eq.s32.totalorder %s26, 0
      %p87 = por %p85, %p86
      %p88 = scmp.ne.s32.totalorder %s74, %s75
      %p89 = scmp.eq.s32.totalorder %s27, 2
      %p90 = por %p88, %p89
      %p92 = scmp.ne.s32.totalorder %s75, %s91
      %p93 = scmp.eq.s32.totalorder %s27, 0
      %p94 = por %p92, %p93
      %s95 = ssub.s32 %s28, %s40
      %p96 = scmp.eq.s32.totalorder %s95, 0
      %s98 = sadd.s32 %s97, 1
      %s99 = scalar_select %p96, %s97, %s98
      %p102 = pneg %p96
      %p103 = scmp.eq.s32.totalorder %s21, 2
      %p104 = por %p102, %p103
      %p105 = scmp.ne.s32.totalorder %s97, %s100
      %p106 = scmp.eq.s32.totalorder %s21, 0
      %p107 = por %p105, %p106
      %p108 = scmp.ne.s32.totalorder %s97, %s100
      %p109 = scmp.eq.s32.totalorder %s26, 2
      %p110 = por %p108, %p109
      %p111 = scmp.ne.s32.totalorder %s100, %s101
      %p112 = scmp.eq.s32.totalorder %s26, 0
      %p113 = por %p111, %p112
      %p114 = scmp.ne.s32.totalorder %s100, %s101
      %p115 = scmp.eq.s32.totalorder %s27, 2
      %p116 = por %p114, %p115
      %p118 = scmp.ne.s32.totalorder %s101, %s117
      %p119 = scmp.eq.s32.totalorder %s27, 0
      %p120 = por %p118, %p119
      %s122 = sadd.s32 %s121, 1
      %p125 = scmp.eq.s32.totalorder %s21, 2
      %p126 = scmp.ne.s32.totalorder %s121, %s123
      %p127 = scmp.eq.s32.totalorder %s21, 0
      %p128 = por %p126, %p127
      %p129 = scmp.ne.s32.totalorder %s121, %s123
      %p130 = scmp.eq.s32.totalorder %s26, 2
      %p131 = por %p129, %p130
      %p132 = scmp.ne.s32.totalorder %s123, %s124
      %p133 = scmp.eq.s32.totalorder %s26, 0
      %p134 = por %p132, %p133
      %p135 = scmp.ne.s32.totalorder %s123, %s124
      %p136 = scmp.eq.s32.totalorder %s27, 2
      %p137 = por %p135, %p136
      %p139 = scmp.ne.s32.totalorder %s124, %s138
      %p140 = scmp.eq.s32.totalorder %s27, 0
      %p141 = por %p139, %p140
      %s143 = sadd.s32 %s142, 1
      %p146 = scmp.eq.s32.totalorder %s21, 2
      %p147 = scmp.ne.s32.totalorder %s142, %s144
      %p148 = scmp.eq.s32.totalorder %s21, 0
      %p149 = por %p147, %p148
      %p150 = scmp.ne.s32.totalorder %s142, %s144
      %p151 = scmp.eq.s32.totalorder %s26, 2
      %p152 = por %p150, %p151
      %p153 = scmp.ne.s32.totalorder %s144, %s145
      %p154 = scmp.eq.s32.totalorder %s26, 0
      %p155 = por %p153, %p154
      %p156 = scmp.ne.s32.totalorder %s144, %s145
      %p157 = scmp.eq.s32.totalorder %s27, 2
      %p158 = por %p156, %p157
      %p160 = scmp.ne.s32.totalorder %s145, %s159
      %p161 = scmp.eq.s32.totalorder %s27, 0
      %p162 = por %p160, %p161
      %s164 = sadd.s32 %s163, 1
      %p167 = scmp.eq.s32.totalorder %s21, 2
      %p168 = scmp.ne.s32.totalorder %s163, %s165
      %p169 = scmp.eq.s32.totalorder %s21, 0
      %p170 = por %p168, %p169
      %p171 = scmp.ne.s32.totalorder %s163, %s165
      %p172 = scmp.eq.s32.totalorder %s26, 2
      %p173 = por %p171, %p172
      %p174 = scmp.ne.s32.totalorder %s165, %s166
      %p175 = scmp.eq.s32.totalorder %s26, 0
      %p176 = por %p174, %p175
      %p177 = scmp.ne.s32.totalorder %s165, %s166
      %p178 = scmp.eq.s32.totalorder %s27, 2
      %p179 = por %p177, %p178
      %p181 = scmp.ne.s32.totalorder %s166, %s180
      %p182 = scmp.eq.s32.totalorder %s27, 0
      %p183 = por %p181, %p182
      %s185 = sadd.s32 %s184, 1
      %p188 = scmp.eq.s32.totalorder %s21, 2
      %p189 = scmp.ne.s32.totalorder %s184, %s186
      %p190 = scmp.eq.s32.totalorder %s21, 0
      %p191 = por %p189, %p190
      %p192 = scmp.ne.s32.totalorder %s184, %s186
      %p193 = scmp.eq.s32.totalorder %s26, 2
      %p194 = por %p192, %p193
      %p195 = scmp.ne.s32.totalorder %s186, %s187
      %p196 = scmp.eq.s32.totalorder %s26, 0
      %p197 = por %p195, %p196
      %p198 = scmp.ne.s32.totalorder %s186, %s187
      %p199 = scmp.eq.s32.totalorder %s27, 2
      %p200 = por %p198, %p199
      %p202 = scmp.ne.s32.totalorder %s187, %s201
      %p203 = scmp.eq.s32.totalorder %s27, 0
      %p204 = por %p202, %p203
      %s205 = ssub.s32 %s28, %s40
      %p206 = scmp.eq.s32.totalorder %s205, 0
      %s208 = sadd.s32 %s207, 1
      %s209 = scalar_select %p206, %s207, %s208
      %p212 = pneg %p206
      %p213 = scmp.eq.s32.totalorder %s21, 2
      %p214 = por %p212, %p213
      %p215 = scmp.ne.s32.totalorder %s207, %s210
      %p216 = scmp.eq.s32.totalorder %s21, 0
      %p217 = por %p215, %p216
      %p218 = scmp.ne.s32.totalorder %s207, %s210
      %p219 = scmp.eq.s32.totalorder %s26, 2
      %p220 = por %p218, %p219
      %p221 = scmp.ne.s32.totalorder %s210, %s211
      %p222 = scmp.eq.s32.totalorder %s26, 0
      %p223 = por %p221, %p222
      %p224 = scmp.ne.s32.totalorder %s210, %s211
      %p225 = scmp.eq.s32.totalorder %s27, 2
      %p226 = por %p224, %p225
      %p228 = scmp.ne.s32.totalorder %s211, %s227
      %p229 = scmp.eq.s32.totalorder %s27, 0
      %p230 = por %p228, %p229
      %s231 = ssub.s32 %s28, %s40
      %p232 = scmp.eq.s32.totalorder %s231, 0
      %s234 = sadd.s32 %s233, 1
      %s235 = scalar_select %p232, %s233, %s234
      %p238 = pneg %p232
      %p239 = scmp.eq.s32.totalorder %s21, 2
      %p240 = por %p238, %p239
      %p241 = scmp.ne.s32.totalorder %s233, %s236
      %p242 = scmp.eq.s32.totalorder %s21, 0
      %p243 = por %p241, %p242
      %p244 = scmp.ne.s32.totalorder %s233, %s236
      %p245 = scmp.eq.s32.totalorder %s26, 2
      %p246 = por %p244, %p245
      %p247 = scmp.ne.s32.totalorder %s236, %s237
      %p248 = scmp.eq.s32.totalorder %s26, 0
      %p249 = por %p247, %p248
      %p250 = scmp.ne.s32.totalorder %s236, %s237
      %p251 = scmp.eq.s32.totalorder %s27, 2
      %p252 = por %p250, %p251
      %p254 = scmp.ne.s32.totalorder %s237, %s253
      %p255 = scmp.eq.s32.totalorder %s27, 0
      %p256 = por %p254, %p255
      %s257 = ssub.s32 %s28, %s40
      %p258 = scmp.eq.s32.totalorder %s257, 0
      %s260 = sadd.s32 %s259, 1
      %s261 = scalar_select %p258, %s259, %s260
      %p264 = pneg %p258
      %p265 = scmp.eq.s32.totalorder %s21, 2
      %p266 = por %p264, %p265
      %p267 = scmp.ne.s32.totalorder %s259, %s262
      %p268 = scmp.eq.s32.totalorder %s21, 0
      %p269 = por %p267, %p268
      %p270 = scmp.ne.s32.totalorder %s259, %s262
      %p271 = scmp.eq.s32.totalorder %s26, 2
      %p272 = por %p270, %p271
      %p273 = scmp.ne.s32.totalorder %s262, %s263
      %p274 = scmp.eq.s32.totalorder %s26, 0
      %p275 = por %p273, %p274
      %p276 = scmp.ne.s32.totalorder %s262, %s263
      %p277 = scmp.eq.s32.totalorder %s27, 2
      %p278 = por %p276, %p277
      %p280 = scmp.ne.s32.totalorder %s263, %s279
      %p281 = scmp.eq.s32.totalorder %s27, 0
      %p282 = por %p280, %p281
      %p283 = scmp.le.s32.totalorder 1, %s21
      %p284 = scmp.lt.s32.totalorder %s21, 4
      %p285 = pnand %p283, %p284
      %p286 = pneg %p285
      // Predicated region
      $region9: #{tpu_custom_call.1} parent=5 // pred_check
        _
      $region10: #{tpu_custom_call.1} parent=5 // pred_check_branch
        %288 = sbr.rel (%p285) target = $region12
      $region11: #{tpu_custom_call.1} parent=5 // pred_region
        %s289 = ssub.s32 %s21, 1
        // Predicated region
        $region13: #{tpu_custom_call.1} parent=11 // pred_check
          %p290 = pneg %p87
        $region14: #{tpu_custom_call.1} parent=11 // pred_check_branch
          %292 = sbr.rel (%p290) target = $region16
        $region15: #{tpu_custom_call.1} parent=11 // pred_region
          %p293 = scmp.lt.s32.totalorder %s30, 0
          %s294 = scalar_select %p293, %s30, 0
          %s295 = smul.addr %s294, 8
          %s296 = scalar_lea.vmem %s1, %s295
        $region16: #{tpu_custom_call.1} parent=11 // pred_fallthru
          _
        // Predicated region
        $region17: #{tpu_custom_call.1} parent=11 // pred_check
          %p297 = pneg %p113
        $region18: #{tpu_custom_call.1} parent=11 // pred_check_branch
          %299 = sbr.rel (%p297) target = $region20
        $region19: #{tpu_custom_call.1} parent=11 // pred_region
          %p300 = scmp.lt.s32.totalorder %s30, 0
          %s301 = scalar_select %p300, %s30, 0
          %s302 = smul.addr %s301, 8
          %s303 = scalar_lea.vmem %s2, %s302
        $region20: #{tpu_custom_call.1} parent=11 // pred_fallthru
          _
        // Predicated region
        $region21: #{tpu_custom_call.1} parent=11 // pred_check
          %p304 = pneg %p134
        $region22: #{tpu_custom_call.1} parent=11 // pred_check_branch
          %306 = sbr.rel (%p304) target = $region24
        $region23: #{tpu_custom_call.1} parent=11 // pred_region
          %s308 = ssub.s32 2048, 2048
          %309 = vsyncadd [#allocation7], %s308
          %s310 = sshll.u32 [#allocation6], 4
          %s311 = int_to_ptr.vmem [resolvable:$true] %s310
          %316 = dma.hbm_to_vmem [thread:$0]  %s3, 2048, %s311, [#allocation7], 128, 128, 8
        $region24: #{tpu_custom_call.1} parent=11 // pred_fallthru
          _
        // Predicated region
        $region25: #{tpu_custom_call.1} parent=11 // pred_check
          %p317 = pneg %p155
        $region26: #{tpu_custom_call.1} parent=11 // pred_check_branch
          %319 = sbr.rel (%p317) target = $region28
        $region27: #{tpu_custom_call.1} parent=11 // pred_region
          _
        $region28: #{tpu_custom_call.1} parent=11 // pred_fallthru
          _
        // Predicated region
        $region29: #{tpu_custom_call.1} parent=11 // pred_check
          %p320 = pneg %p176
        $region30: #{tpu_custom_call.1} parent=11 // pred_check_branch
          %322 = sbr.rel (%p320) target = $region32
        $region31: #{tpu_custom_call.1} parent=11 // pred_region
          %s324 = ssub.s32 2048, 2048
          %325 = vsyncadd [#allocation7], %s324
          %s326 = sshll.u32 [#allocation8], 4
          %s327 = int_to_ptr.vmem [resolvable:$true] %s326
          %332 = dma.hbm_to_vmem [thread:$0]  %s5, 2048, %s327, [#allocation7], 128, 128, 8
        $region32: #{tpu_custom_call.1} parent=11 // pred_fallthru
          _
        // Predicated region
        $region33: #{tpu_custom_call.1} parent=11 // pred_check
          %p333 = pneg %p197
        $region34: #{tpu_custom_call.1} parent=11 // pred_check_branch
          %335 = sbr.rel (%p333) target = $region36
        $region35: #{tpu_custom_call.1} parent=11 // pred_region
          _
        $region36: #{tpu_custom_call.1} parent=11 // pred_fallthru
          _
      $region12: #{tpu_custom_call.1} parent=5 // pred_fallthru
        _
      %p336 = scmp.lt.s32.totalorder %s21, 3
      // Predicated region
      $region37: #{tpu_custom_call.1} parent=5 // pred_check
        %p337 = pneg %p336
      $region38: #{tpu_custom_call.1} parent=5 // pred_check_branch
        %339 = sbr.rel (%p337) target = $region40
      $region39: #{tpu_custom_call.1} parent=5 // pred_region
        // Predicated region
        $region41: #{tpu_custom_call.1} parent=39 // pred_check
          %p340 = pneg %p55
        $region42: #{tpu_custom_call.1} parent=39 // pred_check_branch
          %342 = sbr.rel (%p340) target = $region44
        $region43: #{tpu_custom_call.1} parent=39 // pred_region
          %s343 = sand.u32 %s45, 1
          %s344 = scalar_lea.sflag [#allocation4], %s343
          %s345 = sand.u32 %s45, 1
          %s346 = smul.addr %s345, 32
          %s347 = scalar_lea.vmem [#allocation3], %s346
          %s348 = smul.u32 8, %s28
          %s350 = ssub.s32 512, 512
          %351 = vsyncadd %s344, %s350
          %s352 = smul.addr %s348, 3
          %s353 = sadd.s32 %s29, %s352
          %s354 = smul.addr %s353, 64
          %s355 = scalar_lea.hbm %s0, %s354
          %s356 = sshll.u32 %s347, 4
          %s357 = int_to_ptr.vmem [resolvable:$true] %s356
          %362 = dma.hbm_to_vmem [thread:$0]  %s355, 512, %s357, %s344, 192, 64, 4
        $region44: #{tpu_custom_call.1} parent=39 // pred_fallthru
          _
      $region40: #{tpu_custom_call.1} parent=5 // pred_fallthru
        _
      %p363 = scmp.le.s32.totalorder 1, %s21
      %p364 = scmp.lt.s32.totalorder %s21, 4
      %p365 = pnand %p363, %p364
      %p366 = pneg %p365
      // Predicated region
      $region45: #{tpu_custom_call.1} parent=5 // pred_check
        _
      $region46: #{tpu_custom_call.1} parent=5 // pred_check_branch
        %368 = sbr.rel (%p365) target = $region48
      $region47: #{tpu_custom_call.1} parent=5 // pred_region
        %s369 = ssub.s32 %s21, 1
        %s370 = sand.u32 %s48, 1
        %s371 = scalar_lea.sflag [#allocation4], %s370
        %s372 = sand.u32 %s48, 1
        %s373 = smul.addr %s372, 32
        %s374 = scalar_lea.vmem [#allocation3], %s373
        // Predicated region
        $region49: #{tpu_custom_call.1} parent=47 // pred_check
          %p375 = pneg %p61
        $region50: #{tpu_custom_call.1} parent=47 // pred_check_branch
          %377 = sbr.rel (%p375) target = $region52
        $region51: #{tpu_custom_call.1} parent=47 // pred_region
          %378 = dma.done %s371, 512
        $region52: #{tpu_custom_call.1} parent=47 // pred_fallthru
          _
        // Predicated region
        $region53: #{tpu_custom_call.1} parent=47 // pred_check
          %p379 = pneg %p134
        $region54: #{tpu_custom_call.1} parent=47 // pred_check_branch
          %381 = sbr.rel (%p379) target = $region56
        $region55: #{tpu_custom_call.1} parent=47 // pred_region
          %382 = dma.done [#allocation7], 2048
        $region56: #{tpu_custom_call.1} parent=47 // pred_fallthru
          _
        // Predicated region
        $region57: #{tpu_custom_call.1} parent=47 // pred_check
          %p383 = pneg %p176
        $region58: #{tpu_custom_call.1} parent=47 // pred_check_branch
          %385 = sbr.rel (%p383) target = $region60
        $region59: #{tpu_custom_call.1} parent=47 // pred_region
          %386 = dma.done [#allocation7], 2048
        $region60: #{tpu_custom_call.1} parent=47 // pred_fallthru
          _
        %s387 = sand.u32 %s48, 1
        %s388 = scalar_lea.sflag [#allocation4], %s387
        %s389 = sand.u32 %s48, 1
        %s390 = smul.addr %s389, 32
        %s391 = scalar_lea.vmem [#allocation3], %s390
        %p392 = pneg %p61
        %p393 = pneg %p58
        %p394 = scmp.lt.s32.totalorder %s30, 0
        %s395 = scalar_select %p394, %s30, 0
        %s396 = smul.addr %s395, 8
        %s397 = scalar_lea.vmem %s1, %s396
        %p398 = pneg %p87
        %p399 = pneg %p84
        %p400 = scmp.lt.s32.totalorder %s30, 0
        %s401 = scalar_select %p400, %s30, 0
        %s402 = smul.addr %s401, 8
        %s403 = scalar_lea.vmem %s2, %s402
        %p404 = pneg %p113
        %p405 = pneg %p110
        %p406 = pneg %p134
        %p407 = pneg %p131
        %p408 = pneg %p155
        %p409 = pneg %p152
        %p410 = pneg %p176
        %p411 = pneg %p173
        %p412 = pneg %p197
        %p413 = pneg %p194
        %p414 = pneg %p223
        %p415 = pneg %p220
        %p416 = pneg %p249
        %p417 = pneg %p246
        %p418 = scmp.lt.s32.totalorder %s30, 0
        %s419 = scalar_select %p418, %s30, 0
        %s420 = smul.addr %s419, 8
        %s421 = scalar_lea.vmem %s8, %s420
        %p422 = pneg %p275
        %p423 = pneg %p272
        %p424 = scmp.lt.s32.totalorder %s30, 0
        %s425 = scalar_select %p424, %s30, 0
        %s426 = smul.addr %s425, 8
        %s427 = scalar_lea.vmem %s9, %s426
        %s428 = smul.u32 8, %s30
        %p429 = scmp.lt.s32.totalorder %s30, 0
        %s430 = scalar_select %p429, %s30, 0
        %s431 = smul.addr %s430, 8
        %s432 = scalar_lea.vmem %s1, %s431
        %p433 = scmp.lt.s32.totalorder %s30, 0
        %s434 = scalar_select %p433, %s30, 0
        %s435 = smul.addr %s434, 8
        %s436 = scalar_lea.vmem %s2, %s435
        %p437 = scmp.lt.s32.totalorder %s30, 0
        %s438 = scalar_select %p437, %s30, 0
        %s439 = smul.addr %s438, 8
        %s440 = scalar_lea.vmem %s8, %s439
        %p441 = scmp.lt.s32.totalorder %s30, 0
        %s442 = scalar_select %p441, %s30, 0
        %s443 = smul.addr %s442, 8
        %s444 = scalar_lea.vmem %s9, %s443
        %p445 = scmp.eq.s32.totalorder %s31, 0
        // Predicated region
        $region61: #{tpu_custom_call.1} parent=47 // pred_check
          %p446 = pneg %p445
        $region62: #{tpu_custom_call.1} parent=47 // pred_check_branch
          %448 = sbr.rel (%p446) target = $region64
        $region63: #{tpu_custom_call.1} parent=47 // pred_region
          %449 = vst [vmem:[#allocation2] sm:$0xff] 0.0
        $region64: #{tpu_custom_call.1} parent=47 // pred_fallthru
          _
        %v450 = vld [vmem:[%s374] sm:$0xf]
        %v451 = vld [vmem:[%s374 + $0x4] sm:$0xf]
        %v452 = vld [vmem:[%s374 + $0x8] sm:$0xf]
        %v453 = vld [vmem:[%s374 + $0xc] sm:$0xf]
        %v454 = vld [vmem:[%s374 + $0x10] sm:$0xf]
        %v455 = vld [vmem:[%s374 + $0x14] sm:$0xf]
        %v456 = vld [vmem:[%s374 + $0x18] sm:$0xf]
        %v457 = vld [vmem:[%s374 + $0x1c] sm:$0xf]
        %v458 = vunpack.c.l.bf16 %v450
        %v459 = vunpack.c.l.bf16 %v451
        %v460 = vunpack.c.l.bf16 %v452
        %v461 = vunpack.c.l.bf16 %v453
        %v462 = vunpack.c.l.bf16 %v454
        %v463 = vunpack.c.l.bf16 %v455
        %v464 = vunpack.c.l.bf16 %v456
        %v465 = vunpack.c.l.bf16 %v457
        %v466 = vld [vmem:[%s432] sm:$0xff]
        %v467 = vlaneseq
        %v468 = vshrl.u32 %v467, 7
        %s469 = smul.u32 %s31, 8
        %v470 = vstv %s469
        %v471 = vadd.s32 %v468, %v470
        %v472 = vcombine.high %v466, %v466
        %v474 = vunpack.c.l.s4 1966171168
        %v475 = vunpack.c.0.s8 %v474
        %v476 = vlaneseq
        %v477 = vshrl.u32 %v476, 7
        %v478 = vsub.s32 %v475, %v477
        %v479 = vrot.slane %v466, %v478
        %v481 = vunpack.c.l.s4 1966171168
        %v482 = vunpack.c.0.s8 %v481
        %v483 = vlaneseq
        %v484 = vshrl.u32 %v483, 7
        %v485 = vsub.s32 %v482, %v484
        %v486 = vrot.slane %v472, %v485
        %v487 = vcombine.high %v479, %v479
        %v488 = vcombine.high %v486, %v486
        %v490 = vunpack.c.l.s4 1966171168
        %v491 = vunpack.c.0.s8 %v490
        %v492 = vlaneseq
        %v493 = vshrl.u32 %v492, 7
        %v494 = vsub.s32 %v491, %v493
        %v495 = vrot.slane %v479, %v494
        %v497 = vunpack.c.l.s4 1966171168
        %v498 = vunpack.c.0.s8 %v497
        %v499 = vlaneseq
        %v500 = vshrl.u32 %v499, 7
        %v501 = vsub.s32 %v498, %v500
        %v502 = vrot.slane %v486, %v501
        %v504 = vunpack.c.l.s4 1966171168
        %v505 = vunpack.c.0.s8 %v504
        %v506 = vlaneseq
        %v507 = vshrl.u32 %v506, 7
        %v508 = vsub.s32 %v505, %v507
        %v509 = vrot.slane %v487, %v508
        %v511 = vunpack.c.l.s4 1966171168
        %v512 = vunpack.c.0.s8 %v511
        %v513 = vlaneseq
        %v514 = vshrl.u32 %v513, 7
        %v515 = vsub.s32 %v512, %v514
        %v516 = vrot.slane %v488, %v515
        %v517 = vcombine.high %v495, %v495
        %v518 = vcombine.high %v502, %v502
        %v519 = vcombine.high %v509, %v509
        %v520 = vcombine.high %v516, %v516
        %v521 = vlaneseq
        %v522 = vshrl.u32 %v521, 7
        %v523 = vsub.s32 0, %v522
        %v524 = vrot.slane %v495, %v523
        %v525 = vlaneseq
        %v526 = vshrl.u32 %v525, 7
        %v527 = vsub.s32 0, %v526
        %v528 = vrot.slane %v509, %v527
        %v529 = vlaneseq
        %v530 = vshrl.u32 %v529, 7
        %v531 = vsub.s32 0, %v530
        %v532 = vrot.slane %v517, %v531
        %v533 = vlaneseq
        %v534 = vshrl.u32 %v533, 7
        %v535 = vsub.s32 0, %v534
        %v536 = vrot.slane %v519, %v535
        %v537 = vlaneseq
        %v538 = vshrl.u32 %v537, 7
        %v539 = vsub.s32 0, %v538
        %v540 = vrot.slane %v502, %v539
        %v541 = vlaneseq
        %v542 = vshrl.u32 %v541, 7
        %v543 = vsub.s32 0, %v542
        %v544 = vrot.slane %v516, %v543
        %v545 = vlaneseq
        %v546 = vshrl.u32 %v545, 7
        %v547 = vsub.s32 0, %v546
        %v548 = vrot.slane %v518, %v547
        %v549 = vlaneseq
        %v550 = vshrl.u32 %v549, 7
        %v551 = vsub.s32 0, %v550
        %v552 = vrot.slane %v520, %v551
        %vm553 = vcmp.lt.s32.totalorder %v471, %v524
        %vm554 = vcmp.lt.s32.totalorder %v471, %v528
        %vm555 = vcmp.lt.s32.totalorder %v471, %v532
        %vm556 = vcmp.lt.s32.totalorder %v471, %v536
        %vm557 = vcmp.lt.s32.totalorder %v471, %v540
        %vm558 = vcmp.lt.s32.totalorder %v471, %v544
        %vm559 = vcmp.lt.s32.totalorder %v471, %v548
        %vm560 = vcmp.lt.s32.totalorder %v471, %v552
        %v561 = vsel %vm553, 1, 0
        %v562 = vsel %vm554, 1, 0
        %v563 = vsel %vm555, 1, 0
        %v564 = vsel %vm556, 1, 0
        %v565 = vsel %vm557, 1, 0
        %v566 = vsel %vm558, 1, 0
        %v567 = vsel %vm559, 1, 0
        %v568 = vsel %vm560, 1, 0
        %v569 = vcvt.s32.f32 %v561
        %v570 = vcvt.s32.f32 %v562
        %v571 = vcvt.s32.f32 %v563
        %v572 = vcvt.s32.f32 %v564
        %v573 = vcvt.s32.f32 %v565
        %v574 = vcvt.s32.f32 %v566
        %v575 = vcvt.s32.f32 %v567
        %v576 = vcvt.s32.f32 %v568
        %v577 = vld [vmem:[#allocation2] sm:$0xff]
        %579 = vset.pattern.permute.xlu0 0
        %580 = vperm.xlu0 %579, %v569
        %v581 = vpop.permute.xlu0 %580
        %584 = vset.pattern.permute.xlu0 0
        %585 = vperm.xlu0 %584, %v570
        %v586 = vpop.permute.xlu0 %585
        %589 = vset.pattern.permute.xlu0 0
        %590 = vperm.xlu0 %589, %v571
        %v591 = vpop.permute.xlu0 %590
        %594 = vset.pattern.permute.xlu0 0
        %595 = vperm.xlu0 %594, %v572
        %v596 = vpop.permute.xlu0 %595
        %599 = vset.pattern.permute.xlu0 0
        %600 = vperm.xlu0 %599, %v573
        %v601 = vpop.permute.xlu0 %600
        %604 = vset.pattern.permute.xlu0 0
        %605 = vperm.xlu0 %604, %v574
        %v606 = vpop.permute.xlu0 %605
        %609 = vset.pattern.permute.xlu0 0
        %610 = vperm.xlu0 %609, %v575
        %v611 = vpop.permute.xlu0 %610
        %614 = vset.pattern.permute.xlu0 0
        %615 = vperm.xlu0 %614, %v576
        %v616 = vpop.permute.xlu0 %615
        %v618 = vmul.f32 %v458, %v581
        %v619 = vmul.f32 %v459, %v586
        %v620 = vmul.f32 %v460, %v591
        %v621 = vmul.f32 %v461, %v596
        %v622 = vmul.f32 %v462, %v601
        %v623 = vmul.f32 %v463, %v606
        %v624 = vmul.f32 %v464, %v611
        %v625 = vmul.f32 %v465, %v616
        %v626 = vrot.slane %v618, 4
        %v627 = vadd.f32 %v618, %v626
        %v628 = vrot.slane %v627, 2
        %v629 = vadd.f32 %v627, %v628
        %v630 = vrot.slane %v629, 1
        %v631 = vadd.f32 %v629, %v630
        %v632 = vrot.slane %v619, 4
        %v633 = vadd.f32 %v619, %v632
        %v634 = vrot.slane %v633, 2
        %v635 = vadd.f32 %v633, %v634
        %v636 = vrot.slane %v635, 1
        %v637 = vadd.f32 %v635, %v636
        %v638 = vrot.slane %v620, 4
        %v639 = vadd.f32 %v620, %v638
        %v640 = vrot.slane %v639, 2
        %v641 = vadd.f32 %v639, %v640
        %v642 = vrot.slane %v641, 1
        %v643 = vadd.f32 %v641, %v642
        %v644 = vrot.slane %v621, 4
        %v645 = vadd.f32 %v621, %v644
        %v646 = vrot.slane %v645, 2
        %v647 = vadd.f32 %v645, %v646
        %v648 = vrot.slane %v647, 1
        %v649 = vadd.f32 %v647, %v648
        %v650 = vrot.slane %v622, 4
        %v651 = vadd.f32 %v622, %v650
        %v652 = vrot.slane %v651, 2
        %v653 = vadd.f32 %v651, %v652
        %v654 = vrot.slane %v653, 1
        %v655 = vadd.f32 %v653, %v654
        %v656 = vrot.slane %v623, 4
        %v657 = vadd.f32 %v623, %v656
        %v658 = vrot.slane %v657, 2
        %v659 = vadd.f32 %v657, %v658
        %v660 = vrot.slane %v659, 1
        %v661 = vadd.f32 %v659, %v660
        %v662 = vrot.slane %v624, 4
        %v663 = vadd.f32 %v624, %v662
        %v664 = vrot.slane %v663, 2
        %v665 = vadd.f32 %v663, %v664
        %v666 = vrot.slane %v665, 1
        %v667 = vadd.f32 %v665, %v666
        %v668 = vrot.slane %v625, 4
        %v669 = vadd.f32 %v625, %v668
        %v670 = vrot.slane %v669, 2
        %v671 = vadd.f32 %v669, %v670
        %v672 = vrot.slane %v671, 1
        %v673 = vadd.f32 %v671, %v672
        %vm682 = vcmask 1041409
        %v683 = vsel %vm682, %v637, %v631
        %vm684 = vcmask 1042434
        %v685 = vsel %vm684, %v643, %v683
        %vm686 = vcmask 1043459
        %v687 = vsel %vm686, %v649, %v685
        %vm688 = vcmask 1044484
        %v689 = vsel %vm688, %v655, %v687
        %vm690 = vcmask 1045509
        %v691 = vsel %vm690, %v661, %v689
        %vm692 = vcmask 1046534
        %v693 = vsel %vm692, %v667, %v691
        %vm694 = vcmask 1047559
        %v695 = vsel %vm694, %v673, %v693
        %v697 = vadd.f32 %v577, %v695
        %698 = vst [vmem:[#allocation2] sm:$0xff] %v697
        %p699 = scmp.eq.s32.totalorder %s31, 2
        // Predicated region
        $region65: #{tpu_custom_call.1} parent=47 // pred_check
          %p700 = pneg %p699
        $region66: #{tpu_custom_call.1} parent=47 // pred_check_branch
          %702 = sbr.rel (%p700) target = $region68
        $region67: #{tpu_custom_call.1} parent=47 // pred_region
          %vm703 = vcmp.gt.s32.totalorder %v466, 1
          %v704 = vsel %vm703, %v466, 1
          %v705 = vcvt.s32.f32 %v704
          %v706 = vld [vmem:[#allocation2] sm:$0xff]
          %708 = vset.pattern.permute.xlu0 0
          %709 = vperm.xlu0 %708, %v705
          %v710 = vpop.permute.xlu0 %709
          %v712 = vrcp.pop %v710
          %v713 = vmul.f32 %v706, %v712
          %v714 = vld [vmem:[#allocation6] sm:$0xff]
          %v715 = vld [vmem:[#allocation6 + $0x8] sm:$0xff]
          %v716 = vld [vmem:[#allocation6 + $0x10] sm:$0xff]
          %v717 = vld [vmem:[#allocation6 + $0x18] sm:$0xff]
          %v718 = vld [vmem:[#allocation6 + $0x20] sm:$0xff]
          %v719 = vld [vmem:[#allocation6 + $0x28] sm:$0xff]
          %v720 = vld [vmem:[#allocation6 + $0x30] sm:$0xff]
          %v721 = vld [vmem:[#allocation6 + $0x38] sm:$0xff]
          %v722 = vld [vmem:[#allocation6 + $0x40] sm:$0xff]
          %v723 = vld [vmem:[#allocation6 + $0x48] sm:$0xff]
          %v724 = vld [vmem:[#allocation6 + $0x50] sm:$0xff]
          %v725 = vld [vmem:[#allocation6 + $0x58] sm:$0xff]
          %v726 = vld [vmem:[#allocation6 + $0x60] sm:$0xff]
          %v727 = vld [vmem:[#allocation6 + $0x68] sm:$0xff]
          %v728 = vld [vmem:[#allocation6 + $0x70] sm:$0xff]
          %v729 = vld [vmem:[#allocation6 + $0x78] sm:$0xff]
          %v730 = vld [vmem:[%s4] sm:$0x1]
          %v732 = vlaneseq
          %v733 = vshrl.u32 %v732, 7
          %v734 = vsub.s32 0, %v733
          %v735 = vrot.slane %v730, %v734
          %737 = vmatprep.subr.mxu0 0.0
          %738 = vmatpush1.msra.mxu0 %v714
          %739 = vmatprep.subr.mxu0 0.0
          %740 = vmatpush1.msra.mxu0 %v715
          %741 = vmatprep.subr.mxu0 0.0
          %742 = vmatpush1.msra.mxu0 %v716
          %743 = vmatprep.subr.mxu0 0.0
          %744 = vmatpush1.msra.mxu0 %v717
          %745 = vmatprep.subr.mxu0 0.0
          %746 = vmatpush1.msra.mxu0 %v718
          %747 = vmatprep.subr.mxu0 0.0
          %748 = vmatpush1.msra.mxu0 %v719
          %749 = vmatprep.subr.mxu0 0.0
          %750 = vmatpush1.msra.mxu0 %v720
          %751 = vmatprep.subr.mxu0 0.0
          %752 = vmatpush1.msra.mxu0 %v721
          %753 = vmatprep.subr.mxu0 0.0
          %754 = vmatpush1.msra.mxu0 %v722
          %755 = vmatprep.subr.mxu0 0.0
          %756 = vmatpush1.msra.mxu0 %v723
          %757 = vmatprep.subr.mxu0 0.0
          %758 = vmatpush1.msra.mxu0 %v724
          %759 = vmatprep.subr.mxu0 0.0
          %760 = vmatpush1.msra.mxu0 %v725
          %761 = vmatprep.subr.mxu0 0.0
          %762 = vmatpush1.msra.mxu0 %v726
          %763 = vmatprep.subr.mxu0 0.0
          %764 = vmatpush1.msra.mxu0 %v727
          %765 = vmatprep.subr.mxu0 0.0
          %766 = vmatpush1.msra.mxu0 %v728
          %767 = vmatprep.subr.mxu0 0.0
          %768 = vmatpush1.msra.mxu0 %v729
          %769 = vmatprep.subr.mxu0 0.0
          %770 = vmatpush1.msra.mxu0 0.0
          %771 = vmatprep.subr.mxu0 0.0
          %772 = vmatpush1.msra.mxu0 0.0
          %773 = vmatprep.subr.mxu0 0.0
          %774 = vmatpush1.msra.mxu0 0.0
          %775 = vmatprep.subr.mxu0 0.0
          %776 = vmatpush1.msra.mxu0 0.0
          %777 = vmatprep.subr.mxu0 0.0
          %778 = vmatpush1.msra.mxu0 0.0
          %779 = vmatprep.subr.mxu0 0.0
          %780 = vmatpush1.msra.mxu0 0.0
          %781 = vmatprep.subr.mxu0 0.0
          %782 = vmatpush1.msra.mxu0 0.0
          %783 = vmatprep.subr.mxu0 0.0
          %784 = vmatpush1.msra.mxu0 0.0
          %785 = vmatprep.subr.mxu0 0.0
          %786 = vmatpush1.msra.mxu0 0.0
          %787 = vmatprep.subr.mxu0 0.0
          %788 = vmatpush1.msra.mxu0 0.0
          %789 = vmatprep.subr.mxu0 0.0
          %790 = vmatpush1.msra.mxu0 0.0
          %791 = vmatprep.subr.mxu0 0.0
          %792 = vmatpush1.msra.mxu0 0.0
          %793 = vmatprep.subr.mxu0 0.0
          %794 = vmatpush1.msra.mxu0 0.0
          %795 = vmatprep.subr.mxu0 0.0
          %796 = vmatpush1.msra.mxu0 0.0
          %797 = vmatprep.subr.mxu0 0.0
          %798 = vmatpush1.msra.mxu0 0.0
          %799 = vmatprep.subr.mxu0 0.0
          %800 = vmatpush1.msra.mxu0 0.0
          %801 = vmatprep.mubr.f32.mxu0 0.0
          %802 = vmatmul.mubr.f32.gmra.mrb[0].mxu0 %v713
          %v803 = vpop.f32.mrb[0].mxu0
          %v804 = vadd.f32 %v735, %v803
          %v805 = vpop.f32.mrb[0].mxu0
          %806 = vdwg.mxu0
          %v807 = vld [vmem:[#allocation8] sm:$0xff]
          %v808 = vld [vmem:[#allocation8 + $0x8] sm:$0xff]
          %v809 = vld [vmem:[#allocation8 + $0x10] sm:$0xff]
          %v810 = vld [vmem:[#allocation8 + $0x18] sm:$0xff]
          %v811 = vld [vmem:[#allocation8 + $0x20] sm:$0xff]
          %v812 = vld [vmem:[#allocation8 + $0x28] sm:$0xff]
          %v813 = vld [vmem:[#allocation8 + $0x30] sm:$0xff]
          %v814 = vld [vmem:[#allocation8 + $0x38] sm:$0xff]
          %v815 = vld [vmem:[#allocation8 + $0x40] sm:$0xff]
          %v816 = vld [vmem:[#allocation8 + $0x48] sm:$0xff]
          %v817 = vld [vmem:[#allocation8 + $0x50] sm:$0xff]
          %v818 = vld [vmem:[#allocation8 + $0x58] sm:$0xff]
          %v819 = vld [vmem:[#allocation8 + $0x60] sm:$0xff]
          %v820 = vld [vmem:[#allocation8 + $0x68] sm:$0xff]
          %v821 = vld [vmem:[#allocation8 + $0x70] sm:$0xff]
          %v822 = vld [vmem:[#allocation8 + $0x78] sm:$0xff]
          %v823 = vld [vmem:[%s6] sm:$0x1]
          %v825 = vlaneseq
          %v826 = vshrl.u32 %v825, 7
          %v827 = vsub.s32 0, %v826
          %v828 = vrot.slane %v823, %v827
          %830 = vmatprep.subr.mxu0 0.0
          %831 = vmatpush1.msra.mxu0 %v807
          %832 = vmatprep.subr.mxu0 0.0
          %833 = vmatpush1.msra.mxu0 %v808
          %834 = vmatprep.subr.mxu0 0.0
          %835 = vmatpush1.msra.mxu0 %v809
          %836 = vmatprep.subr.mxu0 0.0
          %837 = vmatpush1.msra.mxu0 %v810
          %838 = vmatprep.subr.mxu0 0.0
          %839 = vmatpush1.msra.mxu0 %v811
          %840 = vmatprep.subr.mxu0 0.0
          %841 = vmatpush1.msra.mxu0 %v812
          %842 = vmatprep.subr.mxu0 0.0
          %843 = vmatpush1.msra.mxu0 %v813
          %844 = vmatprep.subr.mxu0 0.0
          %845 = vmatpush1.msra.mxu0 %v814
          %846 = vmatprep.subr.mxu0 0.0
          %847 = vmatpush1.msra.mxu0 %v815
          %848 = vmatprep.subr.mxu0 0.0
          %849 = vmatpush1.msra.mxu0 %v816
          %850 = vmatprep.subr.mxu0 0.0
          %851 = vmatpush1.msra.mxu0 %v817
          %852 = vmatprep.subr.mxu0 0.0
          %853 = vmatpush1.msra.mxu0 %v818
          %854 = vmatprep.subr.mxu0 0.0
          %855 = vmatpush1.msra.mxu0 %v819
          %856 = vmatprep.subr.mxu0 0.0
          %857 = vmatpush1.msra.mxu0 %v820
          %858 = vmatprep.subr.mxu0 0.0
          %859 = vmatpush1.msra.mxu0 %v821
          %860 = vmatprep.subr.mxu0 0.0
          %861 = vmatpush1.msra.mxu0 %v822
          %862 = vmatprep.subr.mxu0 0.0
          %863 = vmatpush1.msra.mxu0 0.0
          %864 = vmatprep.subr.mxu0 0.0
          %865 = vmatpush1.msra.mxu0 0.0
          %866 = vmatprep.subr.mxu0 0.0
          %867 = vmatpush1.msra.mxu0 0.0
          %868 = vmatprep.subr.mxu0 0.0
          %869 = vmatpush1.msra.mxu0 0.0
          %870 = vmatprep.subr.mxu0 0.0
          %871 = vmatpush1.msra.mxu0 0.0
          %872 = vmatprep.subr.mxu0 0.0
          %873 = vmatpush1.msra.mxu0 0.0
          %874 = vmatprep.subr.mxu0 0.0
          %875 = vmatpush1.msra.mxu0 0.0
          %876 = vmatprep.subr.mxu0 0.0
          %877 = vmatpush1.msra.mxu0 0.0
          %878 = vmatprep.subr.mxu0 0.0
          %879 = vmatpush1.msra.mxu0 0.0
          %880 = vmatprep.subr.mxu0 0.0
          %881 = vmatpush1.msra.mxu0 0.0
          %882 = vmatprep.subr.mxu0 0.0
          %883 = vmatpush1.msra.mxu0 0.0
          %884 = vmatprep.subr.mxu0 0.0
          %885 = vmatpush1.msra.mxu0 0.0
          %886 = vmatprep.subr.mxu0 0.0
          %887 = vmatpush1.msra.mxu0 0.0
          %888 = vmatprep.subr.mxu0 0.0
          %889 = vmatpush1.msra.mxu0 0.0
          %890 = vmatprep.subr.mxu0 0.0
          %891 = vmatpush1.msra.mxu0 0.0
          %892 = vmatprep.subr.mxu0 0.0
          %893 = vmatpush1.msra.mxu0 0.0
          %894 = vmatprep.mubr.f32.mxu0 0.0
          %895 = vmatmul.mubr.f32.gmra.mrb[0].mxu0 %v804
          %v896 = vpop.f32.mrb[0].mxu0
          %v897 = vadd.f32 %v828, %v896
          %v898 = vpop.f32.mrb[0].mxu0
          %899 = vdwg.mxu0
          %v900 = vlaneseq
          %v901 = vand.u32 %v900, 127
          %vm902 = vcmp.lt.s32.totalorder %v901, 8
          %v903 = vsel %vm902, %v897, -1e+30
          %904 = vst [vmem:[#allocation9] sm:$0xff] %v903
          %905 = vmax.xlane.f32.xlu0 %v903
          %v906 = vpop.xlane.xlu0 %905
          %v907 = vsub.f32 %v903, %v906
          %v908 = vmul.f32 %v907, 1.442695
          %v909 = vpow.pop %v908
          %910 = vadd.xlane.f32.xlu0 %v909
          %v911 = vpop.xlane.xlu0 %910
          %v912 = vlog2.pop %v911
          %v913 = vmul.f32 %v912, 0.6931472
          %v914 = vadd.f32 %v906, %v913
          %v915 = vld [vmem:[%s436] sm:$0xff]
          %916 = vset.pattern.permute.xlu0 0
          %917 = vperm.xlu0 %916, %v915
          %v918 = vpop.permute.xlu0 %917
          %vm919 = vcmp.eq.s32.totalorder %v901, %v918
          %v920 = vsel %vm919, 1, 0
          %v921 = vcvt.s32.f32 %v920
          %v922 = vmul.f32 %v903, %v921
          %923 = vadd.xlane.f32.xlu0 %v922
          %v924 = vpop.xlane.xlu0 %923
          %v925 = vsub.f32 %v914, %v924
          %vm926 = vcmask 7168
          %927 = vst.msk [vmem:[%s440] sm:$0xff] %vm926, %v925
          %vm928 = vcmp.eq.f32.partialorder %v903, %v906
          %v929 = vcvt.s32.f32 %v901
          %v930 = vsel %vm928, %v929, 128.0
          %931 = vmin.xlane.f32.xlu0 %v930
          %v932 = vpop.xlane.xlu0 %931
          %v933 = vcvt.f32.s32.to.zero.pseudo %v932
          %934 = vst.msk [vmem:[%s444] sm:$0xff] %vm926, %v933
        $region68: #{tpu_custom_call.1} parent=47 // pred_fallthru
          _
        %p935 = scmp.lt.s32.totalorder %s30, 0
        %s936 = scalar_select %p935, %s30, 0
        %s937 = smul.addr %s936, 8
        %s938 = scalar_lea.vmem %s8, %s937
        %p939 = scmp.lt.s32.totalorder %s30, 0
        %s940 = scalar_select %p939, %s30, 0
        %s941 = smul.addr %s940, 8
        %s942 = scalar_lea.vmem %s9, %s941
        // Predicated region
        $region69: #{tpu_custom_call.1} parent=47 // pred_check
          %p943 = pneg %p220
        $region70: #{tpu_custom_call.1} parent=47 // pred_check_branch
          %945 = sbr.rel (%p943) target = $region72
        $region71: #{tpu_custom_call.1} parent=47 // pred_region
          %s947 = ssub.s32 128, 128
          %948 = vsyncadd [#allocation5], %s947
          %s949 = smul.addr %s30, 128
          %s950 = scalar_lea.hbm %s7, %s949
          %s952 = sshll.u32 [#allocation9], 4
          %s953 = int_to_ptr.vmem [resolvable:$true] %s952
          %955 = dma.vmem_to_hbm [thread:$0]  %s953, 128, %s950, [#allocation5]
        $region72: #{tpu_custom_call.1} parent=47 // pred_fallthru
          _
        // Predicated region
        $region73: #{tpu_custom_call.1} parent=47 // pred_check
          %p956 = pneg %p246
        $region74: #{tpu_custom_call.1} parent=47 // pred_check_branch
          %958 = sbr.rel (%p956) target = $region76
        $region75: #{tpu_custom_call.1} parent=47 // pred_region
          _
        $region76: #{tpu_custom_call.1} parent=47 // pred_fallthru
          _
        // Predicated region
        $region77: #{tpu_custom_call.1} parent=47 // pred_check
          %p959 = pneg %p272
        $region78: #{tpu_custom_call.1} parent=47 // pred_check_branch
          %961 = sbr.rel (%p959) target = $region80
        $region79: #{tpu_custom_call.1} parent=47 // pred_region
          _
        $region80: #{tpu_custom_call.1} parent=47 // pred_fallthru
          _
        // Predicated region
        $region81: #{tpu_custom_call.1} parent=47 // pred_check
          %p962 = pneg %p220
        $region82: #{tpu_custom_call.1} parent=47 // pred_check_branch
          %964 = sbr.rel (%p962) target = $region84
        $region83: #{tpu_custom_call.1} parent=47 // pred_region
          %965 = dma.done [#allocation5], 128
        $region84: #{tpu_custom_call.1} parent=47 // pred_fallthru
          _
        // Predicated region
        $region85: #{tpu_custom_call.1} parent=47 // pred_check
          %p966 = pneg %p246
        $region86: #{tpu_custom_call.1} parent=47 // pred_check_branch
          %968 = sbr.rel (%p966) target = $region88
        $region87: #{tpu_custom_call.1} parent=47 // pred_region
          %p969 = scmp.lt.s32.totalorder %s30, 0
          %s970 = scalar_select %p969, %s30, 0
          %s971 = smul.addr %s970, 8
          %s972 = scalar_lea.vmem %s8, %s971
        $region88: #{tpu_custom_call.1} parent=47 // pred_fallthru
          _
        // Predicated region
        $region89: #{tpu_custom_call.1} parent=47 // pred_check
          %p973 = pneg %p272
        $region90: #{tpu_custom_call.1} parent=47 // pred_check_branch
          %975 = sbr.rel (%p973) target = $region92
        $region91: #{tpu_custom_call.1} parent=47 // pred_region
          %p976 = scmp.lt.s32.totalorder %s30, 0
          %s977 = scalar_select %p976, %s30, 0
          %s978 = smul.addr %s977, 8
          %s979 = scalar_lea.vmem %s9, %s978
        $region92: #{tpu_custom_call.1} parent=47 // pred_fallthru
          _
      $region48: #{tpu_custom_call.1} parent=5 // pred_fallthru
        _
      %p980 = scmp.le.s32.totalorder 2, %s21
      // Predicated region
      $region93: #{tpu_custom_call.1} parent=5 // pred_check
        %p981 = pneg %p980
      $region94: #{tpu_custom_call.1} parent=5 // pred_check_branch
        %983 = sbr.rel (%p981) target = $region96
      $region95: #{tpu_custom_call.1} parent=5 // pred_region
        %s984 = ssub.s32 %s21, 2
      $region96: #{tpu_custom_call.1} parent=5 // pred_fallthru
        _
    $region6: #{tpu_custom_call.1} parent=1 // loop_footer
      %s25 = sadd.s32 1, %s21
    $region7: #{tpu_custom_call.1} parent=1 // loop_footer_branch
      %20 = sbr.rel target = $region3
    $region8: #{tpu_custom_call.1} parent=1 // loop_exit
      _
    %985 = vsyncpa [#allocation4], 1
    %s986 = scalar_lea.sflag [#allocation4], 1
    %987 = vsyncpa %s986, 1
    %988 = vsyncpa [#allocation7], 1
    %989 = vsyncpa [#allocation5], 1
    %s990 = scalar_lea.sflag [#allocation5], 1
    %991 = vsyncpa %s990, 1

</llo_original>
